<compile_context>
chip_gen: v5e
topology: v5e:2x2
jax: 0.10.0
libtpu: 0.0.40
codegen_flags: <defaults>
</compile_context>

<pallas_src>
import jax
import jax.numpy as jnp
from jax.experimental import pallas as pl
from jax.experimental.pallas import tpu as pltpu


def _softmax_tuple_kernel(x1_ref, x2_ref, w12_ref, b12_ref, w3_ref, b3_ref,
                          w4_ref, b4_ref, o_ref):
    # Inputs arrive as f32 tiles; cast to bf16 in VMEM for the MXU (accumulation stays f32).
    xcat = jnp.concatenate([x1_ref[...], x2_ref[...]], axis=-1).astype(jnp.bfloat16)

    # Fused lin1/lin2: xcat @ blockdiag(W1, W2) == [x1 @ W1, x2 @ W2]
    h12 = jnp.dot(xcat, w12_ref[...], preferred_element_type=jnp.float32) + b12_ref[...]
    h12 = jnp.maximum(h12, 0.0)

    # lin3 on cat(h1, h2) with the original full W3 (single K=128 matmul).
    h3 = jnp.dot(h12.astype(jnp.bfloat16), w3_ref[...],
                 preferred_element_type=jnp.float32) + b3_ref[...]
    h3 = jnp.maximum(h3, 0.0)

    # lin4
    logits = jnp.dot(h3.astype(jnp.bfloat16), w4_ref[...],
                     preferred_element_type=jnp.float32) + b4_ref[...]

    # Numerically-stable softmax along dim=1. Exact division so each row sums to 1
    # at f32 precision before the bf16 output cast.
    m = jnp.max(logits, axis=-1, keepdims=True)
    e = jnp.exp(logits - m)
    denom = jnp.sum(e, axis=-1, keepdims=True)
    o_ref[...] = (e / denom).astype(o_ref.dtype)


def _round_up(x, m):
    return ((x + m - 1) // m) * m


def _choose_batch_tile(batch, target=1024):
    """Big batch tiles (>=256 rows), multiples of 16 (bf16 sublane packing), but aim for
    >=4 grid steps when the batch allows (>=2 steps per TensorCore on v7x)."""
    if batch <= 256:
        return batch                      # single block == full array dims (no alignment needed)
    tb = min(_round_up(target, 16), _round_up(batch, 16))
    while tb > 256 and pl.cdiv(batch, tb) < 4:
        tb = _round_up(tb // 2, 16)
    return tb


def softmax_model_tuple(x1, x2, w1, b1, w2, b2, w3, b3, w4, b4, *,
                        out_dtype=jnp.bfloat16, tb=None):
    """x1, x2: (B, num_in) float32. Weights stored (in, out); biases (1, out), all f32."""
    B, num_in = x1.shape
    H = w1.shape[1]
    num_out = w4.shape[1]

    if tb is None:
        tb = _choose_batch_tile(B)
    grid = (pl.cdiv(B, tb),)  # non-divisible batches: Pallas pads the last (partial) block

    # One-time, tiny weight prep: block-diagonal fused lin1/lin2 weight, bf16 MXU operands.
    w12 = jnp.zeros((2 * num_in, 2 * H), jnp.float32)
    w12 = w12.at[:num_in, :H].set(w1).at[num_in:, H:].set(w2).astype(jnp.bfloat16)
    b12 = jnp.concatenate([b1, b2], axis=-1)           # (1, 2H) f32
    w3b = w3.astype(jnp.bfloat16)                       # (2H, H)
    w4b = w4.astype(jnp.bfloat16)                       # (H, num_out)

    const = lambda i: (0, 0)  # constant block index -> weights/biases stay VMEM-resident
    out = pl.pallas_call(
        _softmax_tuple_kernel,
        out_shape=jax.ShapeDtypeStruct((B, num_out), out_dtype),
        grid=grid,
        in_specs=[
            pl.BlockSpec((tb, num_in), lambda i: (i, 0)),   # x1 tile (f32, cast in kernel)
            pl.BlockSpec((tb, num_in), lambda i: (i, 0)),   # x2 tile
            pl.BlockSpec((2 * num_in, 2 * H), const),       # blockdiag(W1, W2)
            pl.BlockSpec((1, 2 * H), const),                # [b1 | b2]
            pl.BlockSpec((2 * H, H), const),                # W3
            pl.BlockSpec((1, H), const),                    # b3
            pl.BlockSpec((H, num_out), const),              # W4
            pl.BlockSpec((1, num_out), const),              # b4
        ],
        out_specs=pl.BlockSpec((tb, num_out), lambda i: (i, 0)),
        compiler_params=pltpu.CompilerParams(
            dimension_semantics=("parallel",),
            # No vmem_limit override: footprint is ~1 MiB, far under every chip's default.
        ),
    )(x1, x2, w12, b12, w3b, b3, w4b, b4)
    return out


def init_params(key, num_in, num_hidden, num_out):
    """Deterministic init mimicking nn.Linear's U(-1/sqrt(fan_in), 1/sqrt(fan_in)).
    Weights stored transposed relative to torch: shape (in, out)."""
    ks = jax.random.split(key, 8)

    def lin(kw, kb, fan_in, fan_out):
        bound = 1.0 / jnp.sqrt(fan_in)
        w = jax.random.uniform(kw, (fan_in, fan_out), jnp.float32, -bound, bound)
        b = jax.random.uniform(kb, (1, fan_out), jnp.float32, -bound, bound)
        return w, b

    w1, b1 = lin(ks[0], ks[1], num_in, num_hidden)
    w2, b2 = lin(ks[2], ks[3], num_in, num_hidden)
    w3, b3 = lin(ks[4], ks[5], num_hidden * 2, num_hidden)
    w4, b4 = lin(ks[6], ks[7], num_hidden, num_out)
    return w1, b1, w2, b2, w3, b3, w4, b4


if __name__ == "__main__":
    num_in, num_hidden, num_out = 32, 64, 16
    batch = 8

    key = jax.random.PRNGKey(0)
    kx1, kx2, kp = jax.random.split(key, 3)
    x1 = jax.random.normal(kx1, (batch, num_in), jnp.float32)
    x2 = jax.random.normal(kx2, (batch, num_in), jnp.float32)
    params = init_params(kp, num_in, num_hidden, num_out)

    out = softmax_model_tuple(x1, x2, *params)
    out = jax.block_until_ready(out)
    out_f32 = out.astype(jnp.float32)

    # Pure-f32 reference (kernel uses bf16 MXU operands + bf16 output -> loosened tolerance).
    w1, b1, w2, b2, w3, b3, w4, b4 = params
    h1 = jnp.maximum(x1 @ w1 + b1, 0.0)
    h2 = jnp.maximum(x2 @ w2 + b2, 0.0)
    h3 = jnp.maximum(jnp.concatenate([h1, h2], axis=1) @ w3 + b3, 0.0)
    ref = jax.nn.softmax(h3 @ w4 + b4, axis=1)

    assert out.shape == (batch, num_out)
    assert not bool(jnp.any(jnp.isnan(out_f32)))
    # Exact in-kernel division => rows sum to 1 up to bf16 output rounding (<~2e-3).
    assert jnp.allclose(jnp.sum(out_f32, axis=1), 1.0, atol=1e-2)
    assert jnp.allclose(out_f32, ref, atol=2e-2, rtol=2e-2)

    print("KERNEL_OK")
</pallas_src>

<mosaic_0001>
module attributes {stable_mosaic.version = 11 : i64} {
  func.func @_softmax_tuple_kernel(%arg0: i32, %arg1: memref<8x32xf32, #tpu.memory_space<vmem>>, %arg2: memref<8x32xf32, #tpu.memory_space<vmem>>, %arg3: memref<64x128xbf16, #tpu.memory_space<vmem>>, %arg4: memref<1x128xf32, #tpu.memory_space<vmem>>, %arg5: memref<128x64xbf16, #tpu.memory_space<vmem>>, %arg6: memref<1x64xf32, #tpu.memory_space<vmem>>, %arg7: memref<64x16xbf16, #tpu.memory_space<vmem>>, %arg8: memref<1x16xf32, #tpu.memory_space<vmem>>, %arg9: memref<8x16xbf16, #tpu.memory_space<vmem>>) attributes {dimension_semantics = [#tpu.dimension_semantics<parallel>], iteration_bounds = array<i64: 1>, scalar_prefetch = 0 : i64, scratch_operands = 0 : i64, tpu.core_type = #tpu.core_type<tc>, window_params = [{transform_indices = @transform_0, window_bounds = array<i64: 8, 32>}, {transform_indices = @transform_1, window_bounds = array<i64: 8, 32>}, {pipeline_mode = #tpu.pipeline_mode<synchronous>, transform_indices = @transform_2, window_bounds = array<i64: 64, 128>}, {pipeline_mode = #tpu.pipeline_mode<synchronous>, transform_indices = @transform_3, window_bounds = array<i64: 1, 128>}, {pipeline_mode = #tpu.pipeline_mode<synchronous>, transform_indices = @transform_4, window_bounds = array<i64: 128, 64>}, {pipeline_mode = #tpu.pipeline_mode<synchronous>, transform_indices = @transform_5, window_bounds = array<i64: 1, 64>}, {pipeline_mode = #tpu.pipeline_mode<synchronous>, transform_indices = @transform_6, window_bounds = array<i64: 64, 16>}, {pipeline_mode = #tpu.pipeline_mode<synchronous>, transform_indices = @transform_7, window_bounds = array<i64: 1, 16>}, {transform_indices = @transform_8, window_bounds = array<i64: 8, 16>}]} {
    %c0 = arith.constant 0 : index
    %c0_0 = arith.constant 0 : index
    %0 = vector.load %arg1[%c0, %c0_0] : memref<8x32xf32, #tpu.memory_space<vmem>>, vector<8x32xf32>
    %c0_1 = arith.constant 0 : index
    %c0_2 = arith.constant 0 : index
    %1 = vector.load %arg2[%c0_1, %c0_2] : memref<8x32xf32, #tpu.memory_space<vmem>>, vector<8x32xf32>
    %2 = tpu.concatenate %0, %1 in 1 : vector<8x32xf32>, vector<8x32xf32> -> vector<8x64xf32>
    %3 = arith.truncf %2 : vector<8x64xf32> to vector<8x64xbf16>
    %c0_3 = arith.constant 0 : index
    %c0_4 = arith.constant 0 : index
    %4 = vector.load %arg3[%c0_3, %c0_4] : memref<64x128xbf16, #tpu.memory_space<vmem>>, vector<64x128xbf16>
    %cst = arith.constant dense<0.000000e+00> : vector<8x128xf32>
    %5 = tpu.matmul %3, %4, %cst {dimension_numbers = #tpu.dot_dimension_numbers<[1], [0], [0], [1], [0, 0, 1, 1], [], []>} : vector<8x64xbf16>, vector<64x128xbf16>, vector<8x128xf32> -> vector<8x128xf32>
    %c0_5 = arith.constant 0 : index
    %c0_6 = arith.constant 0 : index
    %6 = vector.load %arg4[%c0_5, %c0_6] : memref<1x128xf32, #tpu.memory_space<vmem>>, vector<1x128xf32>
    %7 = vector.broadcast %6 : vector<1x128xf32> to vector<8x128xf32>
    %8 = arith.addf %5, %7 : vector<8x128xf32>
    %cst_7 = arith.constant 0.000000e+00 : f32
    %9 = vector.broadcast %cst_7 : f32 to vector<8x128xf32>
    %10 = arith.maximumf %8, %9 : vector<8x128xf32>
    %11 = arith.truncf %10 : vector<8x128xf32> to vector<8x128xbf16>
    %c0_8 = arith.constant 0 : index
    %c0_9 = arith.constant 0 : index
    %12 = vector.load %arg5[%c0_8, %c0_9] : memref<128x64xbf16, #tpu.memory_space<vmem>>, vector<128x64xbf16>
    %cst_10 = arith.constant dense<0.000000e+00> : vector<8x64xf32>
    %13 = tpu.matmul %11, %12, %cst_10 {dimension_numbers = #tpu.dot_dimension_numbers<[1], [0], [0], [1], [0, 0, 1, 1], [], []>} : vector<8x128xbf16>, vector<128x64xbf16>, vector<8x64xf32> -> vector<8x64xf32>
    %c0_11 = arith.constant 0 : index
    %c0_12 = arith.constant 0 : index
    %14 = vector.load %arg6[%c0_11, %c0_12] : memref<1x64xf32, #tpu.memory_space<vmem>>, vector<1x64xf32>
    %15 = vector.broadcast %14 : vector<1x64xf32> to vector<8x64xf32>
    %16 = arith.addf %13, %15 : vector<8x64xf32>
    %cst_13 = arith.constant 0.000000e+00 : f32
    %17 = vector.broadcast %cst_13 : f32 to vector<8x64xf32>
    %18 = arith.maximumf %16, %17 : vector<8x64xf32>
    %19 = arith.truncf %18 : vector<8x64xf32> to vector<8x64xbf16>
    %c0_14 = arith.constant 0 : index
    %c0_15 = arith.constant 0 : index
    %20 = vector.load %arg7[%c0_14, %c0_15] : memref<64x16xbf16, #tpu.memory_space<vmem>>, vector<64x16xbf16>
    %cst_16 = arith.constant dense<0.000000e+00> : vector<8x16xf32>
    %21 = tpu.matmul %19, %20, %cst_16 {dimension_numbers = #tpu.dot_dimension_numbers<[1], [0], [0], [1], [0, 0, 1, 1], [], []>} : vector<8x64xbf16>, vector<64x16xbf16>, vector<8x16xf32> -> vector<8x16xf32>
    %c0_17 = arith.constant 0 : index
    %c0_18 = arith.constant 0 : index
    %22 = vector.load %arg8[%c0_17, %c0_18] : memref<1x16xf32, #tpu.memory_space<vmem>>, vector<1x16xf32>
    %23 = vector.broadcast %22 : vector<1x16xf32> to vector<8x16xf32>
    %24 = arith.addf %21, %23 : vector<8x16xf32>
    %cst_19 = arith.constant dense<0xFF800000> : vector<8xf32>
    %25 = vector.multi_reduction <maximumf>, %24, %cst_19 [1] : vector<8x16xf32> to vector<8xf32>
    %26 = vector.shape_cast %25 : vector<8xf32> to vector<8x1xf32>
    %27 = vector.broadcast %26 : vector<8x1xf32> to vector<8x16xf32>
    %28 = arith.subf %24, %27 : vector<8x16xf32>
    %29 = math.exp %28 : vector<8x16xf32>
    %cst_20 = arith.constant dense<0.000000e+00> : vector<8xf32>
    %30 = vector.multi_reduction <add>, %29, %cst_20 [1] : vector<8x16xf32> to vector<8xf32>
    %31 = vector.shape_cast %30 : vector<8xf32> to vector<8x1xf32>
    %32 = vector.broadcast %31 : vector<8x1xf32> to vector<8x16xf32>
    %33 = arith.divf %29, %32 : vector<8x16xf32>
    %34 = arith.truncf %33 : vector<8x16xf32> to vector<8x16xbf16>
    %c0_21 = arith.constant 0 : index
    %c0_22 = arith.constant 0 : index
    %35 = vector.load %arg9[%c0_21, %c0_22] : memref<8x16xbf16, #tpu.memory_space<vmem>>, vector<8x16xbf16>
    tpu.vector_store %arg9[%c0_21, %c0_22], %34 {strides = array<i32>} : memref<8x16xbf16, #tpu.memory_space<vmem>>, vector<8x16xbf16>,
    return
  }
  func.func @transform_0(%arg0: i32) -> (i32, i32) {
    %c0_i32 = arith.constant 0 : i32
    %c0_i32_0 = arith.constant 0 : i32
    return %arg0, %c0_i32 : i32, i32
  }
  func.func @transform_1(%arg0: i32) -> (i32, i32) {
    %c0_i32 = arith.constant 0 : i32
    %c0_i32_0 = arith.constant 0 : i32
    return %arg0, %c0_i32 : i32, i32
  }
  func.func @transform_2(%arg0: i32) -> (i32, i32) {
    %c0_i32 = arith.constant 0 : i32
    %c0_i32_0 = arith.constant 0 : i32
    %c0_i32_1 = arith.constant 0 : i32
    return %c0_i32, %c0_i32_0 : i32, i32
  }
  func.func @transform_3(%arg0: i32) -> (i32, i32) {
    %c0_i32 = arith.constant 0 : i32
    %c0_i32_0 = arith.constant 0 : i32
    %c0_i32_1 = arith.constant 0 : i32
    return %c0_i32, %c0_i32_0 : i32, i32
  }
  func.func @transform_4(%arg0: i32) -> (i32, i32) {
    %c0_i32 = arith.constant 0 : i32
    %c0_i32_0 = arith.constant 0 : i32
    %c0_i32_1 = arith.constant 0 : i32
    return %c0_i32, %c0_i32_0 : i32, i32
  }
  func.func @transform_5(%arg0: i32) -> (i32, i32) {
    %c0_i32 = arith.constant 0 : i32
    %c0_i32_0 = arith.constant 0 : i32
    %c0_i32_1 = arith.constant 0 : i32
    return %c0_i32, %c0_i32_0 : i32, i32
  }
  func.func @transform_6(%arg0: i32) -> (i32, i32) {
    %c0_i32 = arith.constant 0 : i32
    %c0_i32_0 = arith.constant 0 : i32
    %c0_i32_1 = arith.constant 0 : i32
    return %c0_i32, %c0_i32_0 : i32, i32
  }
  func.func @transform_7(%arg0: i32) -> (i32, i32) {
    %c0_i32 = arith.constant 0 : i32
    %c0_i32_0 = arith.constant 0 : i32
    %c0_i32_1 = arith.constant 0 : i32
    return %c0_i32, %c0_i32_0 : i32, i32
  }
  func.func @transform_8(%arg0: i32) -> (i32, i32) {
    %c0_i32 = arith.constant 0 : i32
    %c0_i32_0 = arith.constant 0 : i32
    return %arg0, %c0_i32 : i32, i32
  }
}

</mosaic_0001>

<llo_original>
// kernel: tpu_custom_call.1
$region0: #{tpu_custom_call.1}
  #allocation0 [shape = 'u32[]', space=smem, size = 0x4, offset = 0x4, fixed_abs, tag = 'smem constant byte address 0x4 - core index']
  #allocation1 [shape = 'u32[72,128]{1,0:T(1,128)}', space=vmem, size = 0x9000, scoped, tag = 'internal scratch']
  %s0 = inlined_call_operand.vmem [shape: f32[8,32], index: 0, kind: input, shape index: {}]
  %s1 = inlined_call_operand.vmem [shape: f32[8,32], index: 1, kind: input, shape index: {}]
  %s2 = inlined_call_operand.vmem [shape: bf16[64,128], index: 2, kind: input, shape index: {}]
  %s3 = inlined_call_operand.vmem [shape: f32[1,128], index: 3, kind: input, shape index: {}]
  %s4 = inlined_call_operand.vmem [shape: bf16[128,64], index: 4, kind: input, shape index: {}]
  %s5 = inlined_call_operand.vmem [shape: f32[1,64], index: 5, kind: input, shape index: {}]
  %s6 = inlined_call_operand.vmem [shape: bf16[64,16], index: 6, kind: input, shape index: {}]
  %s7 = inlined_call_operand.vmem [shape: f32[1,16], index: 7, kind: input, shape index: {}]
  %s8 = inlined_call_operand.hbm [shape: bf16[8,16], index: 8, kind: output, shape index: {}]
  %s9 = sld [smem:[#allocation0]]
  $region42: #{tpu_custom_call.1} parent=0
    _
  %s11 = ssub.s32 1, %s9
  %s12 = scalar_select 0, %s11, %s9
  $region1: #{tpu_custom_call.1} parent=0
    #allocation2 [shape = 'u8[2048]{0}', space=vmem, size = 0x800, scoped, tag = 'output window, operand 0, single buffered']
    #allocation3 [shape = 's32[1]{0}', space=sflag, size = 0x4, scoped, tag = 'scoped memory for tpu_custom_call.1']
    %13 = vsyncpa [#allocation3], 0
    // Predicated region
    $region2: #{tpu_custom_call.1} parent=1 // pred_check
      _
    $region3: #{tpu_custom_call.1} parent=1 // pred_check_branch
      %15 = sbr.rel (0) target = $region5
    $region4: #{tpu_custom_call.1} parent=1 // pred_region
      _
    $region5: #{tpu_custom_call.1} parent=1 // pred_fallthru
      _
    // Predicated region
    $region6: #{tpu_custom_call.1} parent=1 // pred_check
      _
    $region7: #{tpu_custom_call.1} parent=1 // pred_check_branch
      %17 = sbr.rel (0) target = $region9
    $region8: #{tpu_custom_call.1} parent=1 // pred_region
      _
    $region9: #{tpu_custom_call.1} parent=1 // pred_fallthru
      _
    // Predicated region
    $region10: #{tpu_custom_call.1} parent=1 // pred_check
      _
    $region11: #{tpu_custom_call.1} parent=1 // pred_check_branch
      %19 = sbr.rel (0) target = $region13
    $region12: #{tpu_custom_call.1} parent=1 // pred_region
      _
    $region13: #{tpu_custom_call.1} parent=1 // pred_fallthru
      _
    // Predicated region
    $region14: #{tpu_custom_call.1} parent=1 // pred_check
      _
    $region15: #{tpu_custom_call.1} parent=1 // pred_check_branch
      %21 = sbr.rel (0) target = $region17
    $region16: #{tpu_custom_call.1} parent=1 // pred_region
      _
    $region17: #{tpu_custom_call.1} parent=1 // pred_fallthru
      _
    // Predicated region
    $region18: #{tpu_custom_call.1} parent=1 // pred_check
      _
    $region19: #{tpu_custom_call.1} parent=1 // pred_check_branch
      %23 = sbr.rel (0) target = $region21
    $region20: #{tpu_custom_call.1} parent=1 // pred_region
      _
    $region21: #{tpu_custom_call.1} parent=1 // pred_fallthru
      _
    // Predicated region
    $region22: #{tpu_custom_call.1} parent=1 // pred_check
      _
    $region23: #{tpu_custom_call.1} parent=1 // pred_check_branch
      %25 = sbr.rel (0) target = $region25
    $region24: #{tpu_custom_call.1} parent=1 // pred_region
      _
    $region25: #{tpu_custom_call.1} parent=1 // pred_fallthru
      _
    // Predicated region
    $region26: #{tpu_custom_call.1} parent=1 // pred_check
      _
    $region27: #{tpu_custom_call.1} parent=1 // pred_check_branch
      %27 = sbr.rel (0) target = $region29
    $region28: #{tpu_custom_call.1} parent=1 // pred_region
      _
    $region29: #{tpu_custom_call.1} parent=1 // pred_fallthru
      _
    // Predicated region
    $region30: #{tpu_custom_call.1} parent=1 // pred_check
      _
    $region31: #{tpu_custom_call.1} parent=1 // pred_check_branch
      %29 = sbr.rel (0) target = $region33
    $region32: #{tpu_custom_call.1} parent=1 // pred_region
      _
    $region33: #{tpu_custom_call.1} parent=1 // pred_fallthru
      _
    %v31 = vld [vmem:[%s0] sm:$0xff]
    %v32 = vld [vmem:[%s1] sm:$0xff]
    %34 = vrot.lane.b32.xlu0 %v32, 32
    %v35 = vpop.permute.xlu0 %34
    %vm37 = vcmask 261120
    %v38 = vsel %vm37, %v31, %v35
    %v39 = vpack.c.bf16 %v38, %v38
    %v40 = vld [vmem:[%s2] sm:$0xf]
    %v41 = vld [vmem:[%s2 + $0x4] sm:$0xf]
    %v42 = vld [vmem:[%s2 + $0x8] sm:$0xf]
    %v43 = vld [vmem:[%s2 + $0xc] sm:$0xf]
    %v44 = vld [vmem:[%s2 + $0x10] sm:$0xf]
    %v45 = vld [vmem:[%s2 + $0x14] sm:$0xf]
    %v46 = vld [vmem:[%s2 + $0x18] sm:$0xf]
    %v47 = vld [vmem:[%s2 + $0x1c] sm:$0xf]
    %v48 = vld [vmem:[%s3] sm:$0x1]
    %v50 = vperm.slane %v48, 0
    %v60 = vunpack.c.l.b16 %v40
    %v61 = vunpack.c.l.b16 %v41
    %v62 = vunpack.c.l.b16 %v42
    %v63 = vunpack.c.l.b16 %v43
    %v64 = vunpack.c.l.b16 %v44
    %v65 = vunpack.c.l.b16 %v45
    %v66 = vunpack.c.l.b16 %v46
    %v67 = vunpack.c.l.b16 %v47
    %v68 = vpack.c.b16 %v61, %v60
    %v69 = vpack.c.b16 %v63, %v62
    %v70 = vpack.c.b16 %v65, %v64
    %v71 = vpack.c.b16 %v67, %v66
    %vm76 = vcmask 523264
    %v78 = vsel %vm76, %v39, 0
    %80 = vmatpush.bf16.msra.mxu0 0
    %81 = vmatpush.bf16.msra.mxu0 0
    %82 = vmatpush.bf16.msra.mxu0 0
    %83 = vmatpush.bf16.msra.mxu0 0
    %84 = vmatpush.bf16.msra.mxu0 %v71
    %85 = vmatpush.bf16.msra.mxu0 %v70
    %86 = vmatpush.bf16.msra.mxu0 %v69
    %87 = vmatpush.bf16.msra.mxu0 %v68
    %88 = vmatmul.bf16.gmra.mxu0 %v78
    %v89 = vpop.f32.mrf.mxu0
    %v90 = vadd.f32 %v50, %v89
    %v91 = vpop.f32.mrf.mxu0
    %92 = vdwg.mxu0
    %v93 = vmax.f32 %v90, 0.0
    %v94 = vpack.c.bf16 %v93, %v93
    %v95 = vld [vmem:[%s4] sm:$0xf]
    %v96 = vld [vmem:[%s4 + $0x4] sm:$0xf]
    %v97 = vld [vmem:[%s4 + $0x8] sm:$0xf]
    %v98 = vld [vmem:[%s4 + $0xc] sm:$0xf]
    %v99 = vld [vmem:[%s4 + $0x10] sm:$0xf]
    %v100 = vld [vmem:[%s4 + $0x14] sm:$0xf]
    %v101 = vld [vmem:[%s4 + $0x18] sm:$0xf]
    %v102 = vld [vmem:[%s4 + $0x1c] sm:$0xf]
    %v103 = vld [vmem:[%s4 + $0x20] sm:$0xf]
    %v104 = vld [vmem:[%s4 + $0x24] sm:$0xf]
    %v105 = vld [vmem:[%s4 + $0x28] sm:$0xf]
    %v106 = vld [vmem:[%s4 + $0x2c] sm:$0xf]
    %v107 = vld [vmem:[%s4 + $0x30] sm:$0xf]
    %v108 = vld [vmem:[%s4 + $0x34] sm:$0xf]
    %v109 = vld [vmem:[%s4 + $0x38] sm:$0xf]
    %v110 = vld [vmem:[%s4 + $0x3c] sm:$0xf]
    %v111 = vld [vmem:[%s5] sm:$0x1]
    %v113 = vperm.slane %v111, 0
    %v131 = vunpack.c.l.b16 %v95
    %v132 = vunpack.c.l.b16 %v96
    %v133 = vunpack.c.l.b16 %v97
    %v134 = vunpack.c.l.b16 %v98
    %v135 = vunpack.c.l.b16 %v99
    %v136 = vunpack.c.l.b16 %v100
    %v137 = vunpack.c.l.b16 %v101
    %v138 = vunpack.c.l.b16 %v102
    %v139 = vunpack.c.l.b16 %v103
    %v140 = vunpack.c.l.b16 %v104
    %v141 = vunpack.c.l.b16 %v105
    %v142 = vunpack.c.l.b16 %v106
    %v143 = vunpack.c.l.b16 %v107
    %v144 = vunpack.c.l.b16 %v108
    %v145 = vunpack.c.l.b16 %v109
    %v146 = vunpack.c.l.b16 %v110
    %v147 = vpack.c.b16 %v132, %v131
    %v148 = vpack.c.b16 %v134, %v133
    %v149 = vpack.c.b16 %v136, %v135
    %v150 = vpack.c.b16 %v138, %v137
    %v151 = vpack.c.b16 %v140, %v139
    %v152 = vpack.c.b16 %v142, %v141
    %v153 = vpack.c.b16 %v144, %v143
    %v154 = vpack.c.b16 %v146, %v145
    %163 = vmatpush.bf16.msra.mxu0 %v154
    %164 = vmatpush.bf16.msra.mxu0 %v153
    %165 = vmatpush.bf16.msra.mxu0 %v152
    %166 = vmatpush.bf16.msra.mxu0 %v151
    %167 = vmatpush.bf16.msra.mxu0 %v150
    %168 = vmatpush.bf16.msra.mxu0 %v149
    %169 = vmatpush.bf16.msra.mxu0 %v148
    %170 = vmatpush.bf16.msra.mxu0 %v147
    %171 = vmatmul.bf16.gmra.mxu0 %v94
    %v172 = vpop.f32.mrf.mxu0
    %v173 = vadd.f32 %v113, %v172
    %v174 = vpop.f32.mrf.mxu0
    %175 = vdwg.mxu0
    %v176 = vmax.f32 %v173, 0.0
    %v177 = vpack.c.bf16 %v176, %v176
    %v178 = vld [vmem:[%s6] sm:$0xf]
    %v179 = vld [vmem:[%s6 + $0x4] sm:$0xf]
    %v180 = vld [vmem:[%s6 + $0x8] sm:$0xf]
    %v181 = vld [vmem:[%s6 + $0xc] sm:$0xf]
    %v182 = vld [vmem:[%s6 + $0x10] sm:$0xf]
    %v183 = vld [vmem:[%s6 + $0x14] sm:$0xf]
    %v184 = vld [vmem:[%s6 + $0x18] sm:$0xf]
    %v185 = vld [vmem:[%s6 + $0x1c] sm:$0xf]
    %v186 = vld [vmem:[%s7] sm:$0x1]
    %v188 = vperm.slane %v186, 0
    %v198 = vunpack.c.l.b16 %v178
    %v199 = vunpack.c.l.b16 %v179
    %v200 = vunpack.c.l.b16 %v180
    %v201 = vunpack.c.l.b16 %v181
    %v202 = vunpack.c.l.b16 %v182
    %v203 = vunpack.c.l.b16 %v183
    %v204 = vunpack.c.l.b16 %v184
    %v205 = vunpack.c.l.b16 %v185
    %v206 = vpack.c.b16 %v199, %v198
    %v207 = vpack.c.b16 %v201, %v200
    %v208 = vpack.c.b16 %v203, %v202
    %v209 = vpack.c.b16 %v205, %v204
    %v215 = vsel %vm76, %v177, 0
    %217 = vmatpush.bf16.msra.mxu0 0
    %218 = vmatpush.bf16.msra.mxu0 0
    %219 = vmatpush.bf16.msra.mxu0 0
    %220 = vmatpush.bf16.msra.mxu0 0
    %221 = vmatpush.bf16.msra.mxu0 %v209
    %222 = vmatpush.bf16.msra.mxu0 %v208
    %223 = vmatpush.bf16.msra.mxu0 %v207
    %224 = vmatpush.bf16.msra.mxu0 %v206
    %225 = vmatmul.bf16.gmra.mxu0 %v215
    %v226 = vpop.f32.mrf.mxu0
    %v227 = vadd.f32 %v188, %v226
    %v228 = vpop.f32.mrf.mxu0
    %229 = vdwg.mxu0
    %vm230 = vcmask 130048
    %v231 = vsel %vm230, %v227, -inf
    %232 = vmax.xlane.f32.xlu0 %v231
    %v233 = vpop.xlane.xlu0 %232
    %v234 = vsub.f32 %v227, %v233
    %v235 = vmul.f32 %v234, 1.442695
    %v236 = vpow.pop %v235
    %v237 = vsel %vm230, %v236, 0.0
    %238 = vadd.xlane.f32.xlu0 %v237
    %v239 = vpop.xlane.xlu0 %238
    %v240 = vrcp.pop %v239
    %v241 = vmul.f32 %v239, %v240
    %v242 = vsub.f32 1.0, %v241
    %v243 = vmul.f32 %v240, %v242
    %v244 = vadd.f32 %v240, %v243
    %vm245 = vweird.f32 %v239
    %vm246 = vweird.f32 %v240
    %vm247 = vmor %vm245, %vm246
    %v248 = vsel %vm247, %v240, %v244
    %v249 = vand.u32 2147483647, %v239
    %vm250 = vcmp.eq.f32.partialorder %v249, 8.507059e+37
    %v251 = vand.u32 %v239, 2147483648
    %v252 = vor.u32 1.1754944e-38, %v251
    %v253 = vsel %vm250, %v252, %v248
    %v254 = vmul.f32 %v236, %v253
    %v255 = vpack.c.bf16 %v254, %v254
    %vm256 = vcmask 125952
    %257 = vst.msk [vmem:[#allocation2] sm:$0xf] %vm256, %v255
    // Predicated region
    $region34: #{tpu_custom_call.1} parent=1 // pred_check
      _
    $region35: #{tpu_custom_call.1} parent=1 // pred_check_branch
      %259 = sbr.rel (0) target = $region37
    $region36: #{tpu_custom_call.1} parent=1 // pred_region
      %261 = vsyncadd [#allocation3], 0
      %s263 = sshll.u32 [#allocation2], 4
      %s264 = int_to_ptr.vmem [resolvable:$true] %s263
      %s265 = sshll.u32 %s8, 4
      %s266 = int_to_ptr.hbm [resolvable:$true] %s265
      %268 = dma.vmem_to_hbm [thread:$0]  %s264, 64, %s266, [#allocation3]
    $region37: #{tpu_custom_call.1} parent=1 // pred_fallthru
      _
    // Predicated region
    $region38: #{tpu_custom_call.1} parent=1 // pred_check
      _
    $region39: #{tpu_custom_call.1} parent=1 // pred_check_branch
      %270 = sbr.rel (0) target = $region41
    $region40: #{tpu_custom_call.1} parent=1 // pred_region
      %272 = dma.done [#allocation3], 64
    $region41: #{tpu_custom_call.1} parent=1 // pred_fallthru
      _
    %273 = vsyncpa [#allocation3], 1

</llo_original>
